<compile_context>
chip_gen: v7x
topology: tpu7x:2x2x1
jax: 0.10.0
libtpu: 0.0.40
codegen_flags: <defaults>
</compile_context>

<pallas_src>
import functools

import jax
import jax.numpy as jnp
from jax.experimental import pallas as pl
from jax.experimental.pallas import tpu as pltpu


# ----------------------------------------------------------------------------
# pltpu.roll sign-convention probe (expected to match jnp.roll; probe to be robust).
# Runs one tiny kernel once and caches a static Python int.
# ----------------------------------------------------------------------------
@functools.lru_cache(maxsize=None)
def _roll_sign() -> int:
    def probe(x_ref, o_ref):
        o_ref[...] = pltpu.roll(x_ref[...], 1, axis=1)

    x = jnp.broadcast_to(jnp.arange(128, dtype=jnp.float32), (8, 128))
    y = pl.pallas_call(probe, out_shape=jax.ShapeDtypeStruct((8, 128), jnp.float32))(x)
    # jnp.roll convention: out[p] = in[p - shift]  ->  out[0, 1] == in[0, 0] == 0
    return 1 if int(y[0, 1]) == 0 else -1


# ----------------------------------------------------------------------------
# Kernel 1: fused 3x3 'same' conv (single bf16 MXU matmul) + bias + ReLU
#           + per-image BatchNorm sum / sum-of-squares.  One image per grid step.
# ----------------------------------------------------------------------------
def _conv_relu_stats_kernel(u_ref, w_ref, b_ref, o_ref, psum_ref, psumsq_ref,
                            *, hu: int, wu: int, roll_sign: int):
    # u_ref     : (1, Ci, Hu*Wu) f32   x2-upsampled input, flat spatial on lanes
    # w_ref     : (Co, 9*Ci)     bf16  conv weights, row order (dy, dx, ci)
    # b_ref     : (Co, 1)        f32   conv bias
    # o_ref     : (1, Co, Hu*Wu) f32   ReLU(conv + bias)
    # psum_ref  : (1, Co, 1)     f32   per-image channel sum        (for BN)
    # psumsq_ref: (1, Co, 1)     f32   per-image channel sum-of-sq  (for BN)
    p_tot = u_ref.shape[2]
    u = u_ref[0]                                              # (Ci, P) f32

    # Flat-index row / column of every lane position (for 'same' zero-pad masks).
    pidx = jax.lax.broadcasted_iota(jnp.int32, (1, p_tot), 1)
    row = pidx // wu
    col = pidx % wu

    taps = []
    for dy in range(3):
        for dx in range(3):
            oy, ox = dy - 1, dx - 1
            # Output pixel (r, c) needs u[r + oy, c + ox] (zero if out of bounds).
            # In the flat layout that is a lane rotation by -(oy*Wu + ox) (jnp.roll
            # convention); boundary wrap-arounds are exactly the OOB positions -> masked.
            shift = (roll_sign * (-(oy * wu + ox))) % p_tot
            t = u if shift == 0 else pltpu.roll(u, shift, axis=1)
            conds = []
            if oy == -1:
                conds.append(row >= 1)
            elif oy == 1:
                conds.append(row < hu - 1)
            if ox == -1:
                conds.append(col >= 1)
            elif ox == 1:
                conds.append(col < wu - 1)
            if conds:
                valid = conds[0]
                for cond in conds[1:]:
                    valid = jnp.logical_and(valid, cond)
                t = jnp.where(valid, t, 0.0)
            taps.append(t)

    patches = jnp.concatenate(taps, axis=0)                   # (9*Ci, P) im2col, f32
    acc = jnp.dot(w_ref[...], patches.astype(w_ref.dtype),    # bf16 MXU operands,
                  preferred_element_type=jnp.float32)         # f32 accumulation: (Co, P)
    y = jnp.maximum(acc + b_ref[...], 0.0)                    # bias + ReLU (f32 VPU)

    o_ref[0] = y.astype(o_ref.dtype)
    psum_ref[0] = jnp.sum(y, axis=1, keepdims=True)
    psumsq_ref[0] = jnp.sum(y * y, axis=1, keepdims=True)


# ----------------------------------------------------------------------------
# Kernel 2: streaming per-channel affine normalization  y = x * scale + shift
#           (scale/shift already fold mean, var, gamma, beta).  Lane-dense.
# ----------------------------------------------------------------------------
def _bn_norm_kernel(y_ref, scale_ref, shift_ref, o_ref):
    # y_ref / o_ref: (1, Co, Hu*Wu) f32 ; scale/shift: (Co, 1) f32
    o_ref[0] = (y_ref[0] * scale_ref[...] + shift_ref[...]).astype(o_ref.dtype)


# ----------------------------------------------------------------------------
# Wrapper
# ----------------------------------------------------------------------------
def deconv_block(x_nchw, w_oihw, bias, gamma, beta, eps=1e-5,
                 mxu_dtype=jnp.bfloat16):
    """Forward of DeconvBlock: BatchNorm(ReLU(conv3x3(upsample_x2(x)))) with batch stats."""
    n, ci, h, w = x_nchw.shape
    co = w_oihw.shape[0]
    hu, wu = 2 * h, 2 * w
    p_tot = hu * wu

    # x2 nearest-neighbour upsample + flatten spatial (reshape is free, stays NCHW-major,
    # so no layout transposes of the activations are ever required).
    u = jnp.repeat(jnp.repeat(x_nchw, 2, axis=2), 2, axis=3)          # (N, Ci, Hu, Wu)
    u = u.reshape(n, ci, p_tot).astype(jnp.float32)

    # Conv weights (Co, Ci, 3, 3) -> (Co, 9*Ci), row order (dy, dx, ci); bf16 for the MXU.
    w2 = jnp.transpose(w_oihw, (0, 2, 3, 1)).reshape(co, 9 * ci).astype(mxu_dtype)
    b2 = bias.reshape(co, 1).astype(jnp.float32)

    kernel = functools.partial(_conv_relu_stats_kernel, hu=hu, wu=wu,
                               roll_sign=_roll_sign())
    conv, psum, psumsq = pl.pallas_call(
        kernel,
        out_shape=(jax.ShapeDtypeStruct((n, co, p_tot), jnp.float32),
                   jax.ShapeDtypeStruct((n, co, 1), jnp.float32),
                   jax.ShapeDtypeStruct((n, co, 1), jnp.float32)),
        grid=(n,),
        in_specs=[
            pl.BlockSpec((1, ci, p_tot), lambda i: (i, 0, 0)),
            pl.BlockSpec((co, 9 * ci), lambda i: (0, 0)),   # stays resident across grid
            pl.BlockSpec((co, 1), lambda i: (0, 0)),
        ],
        out_specs=(pl.BlockSpec((1, co, p_tot), lambda i: (i, 0, 0)),
                   pl.BlockSpec((1, co, 1), lambda i: (i, 0, 0)),
                   pl.BlockSpec((1, co, 1), lambda i: (i, 0, 0))),
        compiler_params=pltpu.CompilerParams(
            dimension_semantics=("parallel",)),
    )(u, w2, b2)

    # BatchNorm2d training-mode batch statistics (biased variance), folded into a single
    # per-channel scale/shift.  The cross-batch reduction is over just 2*Co scalars.
    count = jnp.float32(n * p_tot)
    mean = jnp.sum(psum, axis=0) / count                     # (Co, 1)
    var = jnp.sum(psumsq, axis=0) / count - mean * mean
    var = jnp.maximum(var, 0.0)                              # guard E[x^2]-E[x]^2 cancellation
    scale = gamma.reshape(co, 1).astype(jnp.float32) / jnp.sqrt(var + eps)
    shift = beta.reshape(co, 1).astype(jnp.float32) - mean * scale

    out = pl.pallas_call(
        _bn_norm_kernel,
        out_shape=jax.ShapeDtypeStruct((n, co, p_tot), jnp.float32),
        grid=(n,),
        in_specs=[
            pl.BlockSpec((1, co, p_tot), lambda i: (i, 0, 0)),
            pl.BlockSpec((co, 1), lambda i: (0, 0)),
            pl.BlockSpec((co, 1), lambda i: (0, 0)),
        ],
        out_specs=pl.BlockSpec((1, co, p_tot), lambda i: (i, 0, 0)),
        compiler_params=pltpu.CompilerParams(
            dimension_semantics=("parallel",)),
    )(conv, scale, shift)

    # (N, Co, Hu*Wu) -> (N, Co, Hu, Wu): contiguous NCHW, free reshape (no transpose).
    return out.reshape(n, co, hu, wu)


if __name__ == "__main__":
    # DeconvBlock(fi=4, fo=8) on input (N=2, C=4, H=16, W=16) -> (2, 8, 32, 32).
    N, FI, FO, H, W = 2, 4, 8, 16, 16
    key = jax.random.PRNGKey(0)
    kx, kw, kb = jax.random.split(key, 3)

    x = jax.random.normal(kx, (N, FI, H, W), jnp.float32)
    w = jax.random.normal(kw, (FO, FI, 3, 3), jnp.float32) * 0.1   # Conv2d weight (OIHW)
    b = jax.random.normal(kb, (FO,), jnp.float32) * 0.1            # Conv2d bias
    gamma = jnp.ones((FO,), jnp.float32)                           # BatchNorm2d defaults
    beta = jnp.zeros((FO,), jnp.float32)

    y = deconv_block(x, w, b, gamma, beta)
    jax.block_until_ready(y)
    assert y.shape == (N, FO, 2 * H, 2 * W), y.shape

    # Reference forward (same bf16 rounding of the MXU operands, f32 everywhere else).
    def reference(x, w, b, gamma, beta, eps=1e-5):
        xb = x.astype(jnp.bfloat16).astype(jnp.float32)
        wb = w.astype(jnp.bfloat16).astype(jnp.float32)
        u = jnp.repeat(jnp.repeat(xb, 2, axis=2), 2, axis=3)
        yc = jax.lax.conv_general_dilated(
            u, wb, window_strides=(1, 1), padding=((1, 1), (1, 1)),
            dimension_numbers=("NCHW", "OIHW", "NCHW"))
        yc = jnp.maximum(yc + b.reshape(1, -1, 1, 1), 0.0)
        mean = jnp.mean(yc, axis=(0, 2, 3), keepdims=True)
        var = jnp.mean((yc - mean) ** 2, axis=(0, 2, 3), keepdims=True)
        return ((yc - mean) / jnp.sqrt(var + eps)) * gamma.reshape(1, -1, 1, 1) \
            + beta.reshape(1, -1, 1, 1)

    y_ref = reference(x, w, b, gamma, beta)
    assert float(jnp.max(jnp.abs(y - y_ref))) < 5e-3
    print("KERNEL_OK")
</pallas_src>

<mosaic_0001>
module attributes {stable_mosaic.version = 11 : i64} {
  func.func @probe(%arg0: memref<8x128xf32, #tpu.memory_space<vmem>>, %arg1: memref<8x128xf32, #tpu.memory_space<vmem>>) attributes {dimension_semantics = [], scalar_prefetch = 0 : i64, scratch_operands = 0 : i64, tpu.core_type = #tpu.core_type<tc>} {
    %c0 = arith.constant 0 : index
    %c0_0 = arith.constant 0 : index
    %0 = vector.load %arg0[%c0, %c0_0] : memref<8x128xf32, #tpu.memory_space<vmem>>, vector<8x128xf32>
    %c1_i32 = arith.constant 1 : i32
    %1 = tpu.dynamic_rotate %0 by %c1_i32 dim 1 : vector<8x128xf32>, i32 -> vector<8x128xf32>
    %c0_1 = arith.constant 0 : index
    %c0_2 = arith.constant 0 : index
    %2 = vector.load %arg1[%c0_1, %c0_2] : memref<8x128xf32, #tpu.memory_space<vmem>>, vector<8x128xf32>
    tpu.vector_store %arg1[%c0_1, %c0_2], %1 {strides = array<i32>} : memref<8x128xf32, #tpu.memory_space<vmem>>, vector<8x128xf32>,
    return
  }
}

</mosaic_0001>

<llo_original>
// kernel: tpu_custom_call.1
$region0: #{tpu_custom_call.1}
  #allocation0 [shape = 'u32[]', space=smem, size = 0x4, offset = 0x4, fixed_abs, tag = 'smem constant byte address 0x4 - core index']
  #allocation1 [shape = 'u32[144,128]{1,0:T(1,128)}', space=vmem, size = 0x12000, scoped, tag = 'internal scratch']
  %s0 = inlined_call_operand.hbm [shape: f32[8,128], index: 0, kind: input, shape index: {}]
  %s1 = inlined_call_operand.hbm [shape: f32[8,128], index: 1, kind: output, shape index: {}]
  %s2 = sld [smem:[#allocation0]]
  $region18: #{tpu_custom_call.1} parent=0
    _
  %s4 = ssub.s32 1, %s2
  %s5 = scalar_select 0, %s4, %s2
  $region1: #{tpu_custom_call.1} parent=0
    #allocation2 [shape = 'u8[4096]{0}', space=vmem, size = 0x1000, scoped, tag = 'input window, operand 0, single buffered']
    #allocation3 [shape = 's32[1]{0}', space=sflag, size = 0x4, scoped, tag = 'scoped memory for tpu_custom_call.1']
    #allocation4 [shape = 's32[1]{0}', space=sflag, size = 0x4, scoped, tag = 'scoped memory for tpu_custom_call.1']
    #allocation5 [shape = 'u8[4096]{0}', space=vmem, size = 0x1000, scoped, tag = 'output window, operand 0, single buffered']
    %6 = vsyncpa [#allocation3], 0
    %7 = vsyncpa [#allocation4], 0
    // Predicated region
    $region2: #{tpu_custom_call.1} parent=1 // pred_check
      _
    $region3: #{tpu_custom_call.1} parent=1 // pred_check_branch
      %9 = sbr.rel (0) target = $region5
    $region4: #{tpu_custom_call.1} parent=1 // pred_region
      %s11 = ssub.s32 128, 128
      %12 = vsyncadd [#allocation3], %s11
      %s14 = sshll.u32 [#allocation2], 4
      %s15 = int_to_ptr.vmem [resolvable:$true] %s14
      %17 = dma.hbm_to_vmem [thread:$0]  %s0, 128, %s15, [#allocation3]
    $region5: #{tpu_custom_call.1} parent=1 // pred_fallthru
      _
    // Predicated region
    $region6: #{tpu_custom_call.1} parent=1 // pred_check
      _
    $region7: #{tpu_custom_call.1} parent=1 // pred_check_branch
      %19 = sbr.rel (0) target = $region9
    $region8: #{tpu_custom_call.1} parent=1 // pred_region
      %20 = dma.done [#allocation3], 128
    $region9: #{tpu_custom_call.1} parent=1 // pred_fallthru
      _
    %v21 = vld [vmem:[#allocation2] sm:$0xff]
    %22 = vrot.lane.b32.xlu0 %v21, 1
    %v23 = vpop.permute.xlu0 %22
    %24 = vst [vmem:[#allocation5] sm:$0xff] %v23
    // Predicated region
    $region10: #{tpu_custom_call.1} parent=1 // pred_check
      _
    $region11: #{tpu_custom_call.1} parent=1 // pred_check_branch
      %26 = sbr.rel (0) target = $region13
    $region12: #{tpu_custom_call.1} parent=1 // pred_region
      %s28 = ssub.s32 128, 128
      %29 = vsyncadd [#allocation4], %s28
      %s31 = sshll.u32 [#allocation5], 4
      %s32 = int_to_ptr.vmem [resolvable:$true] %s31
      %34 = dma.vmem_to_hbm [thread:$0]  %s32, 128, %s1, [#allocation4]
    $region13: #{tpu_custom_call.1} parent=1 // pred_fallthru
      _
    // Predicated region
    $region14: #{tpu_custom_call.1} parent=1 // pred_check
      _
    $region15: #{tpu_custom_call.1} parent=1 // pred_check_branch
      %36 = sbr.rel (0) target = $region17
    $region16: #{tpu_custom_call.1} parent=1 // pred_region
      %37 = dma.done [#allocation4], 128
    $region17: #{tpu_custom_call.1} parent=1 // pred_fallthru
      _
    %38 = vsyncpa [#allocation3], 1
    %39 = vsyncpa [#allocation4], 1

</llo_original>
